<compile_context>
chip_gen: v7x
topology: tpu7x:2x2x1
jax: 0.10.0
libtpu: 0.0.40
codegen_flags: <defaults>
</compile_context>

<pallas_src>
import jax
import jax.numpy as jnp
from jax.experimental import pallas as pl
from jax.experimental.pallas import tpu as pltpu

EPS = 1e-5
K_PAD = 32          # 23 input features zero-padded to a sublane-aligned K
HEAD_W = 128        # fused (mu | value) head width, lane-dense
MAX_TB = 1024       # batch-tile cap (double-buffered tiles stay < 1.5 MiB VMEM)


def _round_up(n, m):
    return ((n + m - 1) // m) * m


def _mlp_kernel(x_ref, w1_ref, b1_ref, w2_ref, b2_ref, w3_ref, b3_ref,
                wh_ref, bh_ref, out_ref):
    # x_ref: [TB, 32] bf16 (input-BN already folded into w1/b1).
    # Weights arrive as bf16; matmuls accumulate in f32; bias add / tanh in f32.
    h = jnp.tanh(
        jnp.dot(x_ref[...], w1_ref[...], preferred_element_type=jnp.float32)
        + b1_ref[...]
    )                                                                # [TB, 256] f32
    h = jnp.tanh(
        jnp.dot(h.astype(jnp.bfloat16), w2_ref[...],
                preferred_element_type=jnp.float32) + b2_ref[...]
    )                                                                # [TB, 256] f32
    h = jnp.tanh(
        jnp.dot(h.astype(jnp.bfloat16), w3_ref[...],
                preferred_element_type=jnp.float32) + b3_ref[...]
    )                                                                # [TB, 128] f32
    # Fused heads: cols 0:4 = mu, col 4 = value (raw), rest zero-padded.
    out_ref[...] = (
        jnp.dot(h.astype(jnp.bfloat16), wh_ref[...],
                preferred_element_type=jnp.float32) + bh_ref[...]
    )                                                                # [TB, 128] f32


def actor_critic_forward(x, params):
    """x: [B, 23] float32. Returns (mu [B,4], sigma [4], value [B,1])."""
    B, F = x.shape

    # ---- input BatchNorm1d(23, affine=False), training mode (batch stats),
    #      folded into layer-1 weights (cheap JAX pre-op) ----
    mean = jnp.mean(x, axis=0)
    var = jnp.mean((x - mean) ** 2, axis=0)
    inv_std = jax.lax.rsqrt(var + EPS)
    w1_eff = params["w1"] * inv_std[:, None]                       # [23, 256]
    b1_eff = params["b1"] - (mean * inv_std) @ params["w1"]        # [1, 256]

    # ---- pad first contraction K: 23 -> 32 ----
    x_p = jnp.pad(x, ((0, 0), (0, K_PAD - F)))
    w1_p = jnp.pad(w1_eff, ((0, K_PAD - F), (0, 0)))

    # ---- fuse heads into one lane-dense [128, 128] weight ----
    wh = jnp.concatenate([params["wmu"], params["wv"]], axis=1)    # [128, 5]
    wh = jnp.pad(wh, ((0, 0), (0, HEAD_W - 5)))                    # [128, 128]
    bh = jnp.concatenate([params["bmu"], params["bv"]], axis=1)    # [1, 5]
    bh = jnp.pad(bh, ((0, 0), (0, HEAD_W - 5)))                    # [1, 128]

    # ---- bf16 matmul operands (cast once, outside the grid loop) ----
    x_b = x_p.astype(jnp.bfloat16)
    w1b = w1_p.astype(jnp.bfloat16)
    w2b = params["w2"].astype(jnp.bfloat16)
    w3b = params["w3"].astype(jnp.bfloat16)
    whb = wh.astype(jnp.bfloat16)

    # ---- batch tiling ----
    B8 = _round_up(B, 8)
    TB = min(MAX_TB, B8)
    G = pl.cdiv(B8, TB)
    BP = G * TB
    if BP != B:
        x_b = jnp.pad(x_b, ((0, BP - B), (0, 0)))

    const = lambda i: (0, 0)          # weights/biases: VMEM-resident across grid
    head = pl.pallas_call(
        _mlp_kernel,
        out_shape=jax.ShapeDtypeStruct((BP, HEAD_W), jnp.float32),
        grid=(G,),
        in_specs=[
            pl.BlockSpec((TB, K_PAD), lambda i: (i, 0)),   # x tile (bf16)
            pl.BlockSpec((K_PAD, 256), const),             # w1 (bf16)
            pl.BlockSpec((1, 256), const),                 # b1 (f32)
            pl.BlockSpec((256, 256), const),               # w2 (bf16)
            pl.BlockSpec((1, 256), const),                 # b2
            pl.BlockSpec((256, 128), const),               # w3 (bf16)
            pl.BlockSpec((1, 128), const),                 # b3
            pl.BlockSpec((128, HEAD_W), const),            # fused head weight (bf16)
            pl.BlockSpec((1, HEAD_W), const),              # fused head bias
        ],
        out_specs=pl.BlockSpec((TB, HEAD_W), lambda i: (i, 0)),
        compiler_params=pltpu.CompilerParams(
            dimension_semantics=("parallel",),             # megacore on v7x
        ),
    )(x_b, w1b, b1_eff, w2b, params["b2"], w3b, params["b3"], whb, bh)

    head = head[:B]
    mu = head[:, 0:4]
    v = head[:, 4:5]

    # ---- value BatchNorm1d(1, affine=False), training mode (batch stats) ----
    v_mean = jnp.mean(v, axis=0, keepdims=True)
    v_var = jnp.mean((v - v_mean) ** 2, axis=0, keepdims=True)
    value = (v - v_mean) * jax.lax.rsqrt(v_var + EPS)

    # ---- sigma = exp(sigma_param): x-independent, plain JAX ----
    sigma = jnp.exp(params["sigma"])

    return mu, sigma, value


def init_params(key):
    """Deterministic, PyTorch-Linear-like init (uniform +/- 1/sqrt(fan_in))."""
    def linear(key, fan_in, fan_out):
        kw, kb = jax.random.split(key)
        bound = 1.0 / jnp.sqrt(float(fan_in))
        w = jax.random.uniform(kw, (fan_in, fan_out), jnp.float32, -bound, bound)
        b = jax.random.uniform(kb, (1, fan_out), jnp.float32, -bound, bound)
        return w, b

    k1, k2, k3, k4, k5 = jax.random.split(key, 5)
    w1, b1 = linear(k1, 23, 256)
    w2, b2 = linear(k2, 256, 256)
    w3, b3 = linear(k3, 256, 128)
    wmu, bmu = linear(k4, 128, 4)
    wv, bv = linear(k5, 128, 1)
    sigma = jnp.zeros((4,), jnp.float32)   # nn.Parameter(torch.zeros(4))
    return dict(
        w1=w1, b1=b1, w2=w2, b2=b2, w3=w3, b3=b3,
        wmu=wmu, bmu=bmu, wv=wv, bv=bv, sigma=sigma,
    )


if __name__ == "__main__":
    key = jax.random.PRNGKey(0)
    kx, kp = jax.random.split(key)

    B = 8
    x = jax.random.normal(kx, (B, 23), jnp.float32)
    params = init_params(kp)

    mu, sigma, value = jax.jit(actor_critic_forward)(x, params)
    jax.block_until_ready((mu, sigma, value))

    assert mu.shape == (B, 4) and sigma.shape == (4,) and value.shape == (B, 1)
    assert bool(jnp.all(jnp.isfinite(mu)))
    assert bool(jnp.all(sigma == 1.0))        # exp(zeros(4)) == ones(4)
    assert bool(jnp.all(jnp.isfinite(value)))

    print("KERNEL_OK")
</pallas_src>

<mosaic_0001>
module attributes {stable_mosaic.version = 11 : i64} {
  func.func @_mlp_kernel(%arg0: i32, %arg1: memref<8x32xbf16, #tpu.memory_space<vmem>>, %arg2: memref<32x256xbf16, #tpu.memory_space<vmem>>, %arg3: memref<1x256xf32, #tpu.memory_space<vmem>>, %arg4: memref<256x256xbf16, #tpu.memory_space<vmem>>, %arg5: memref<1x256xf32, #tpu.memory_space<vmem>>, %arg6: memref<256x128xbf16, #tpu.memory_space<vmem>>, %arg7: memref<1x128xf32, #tpu.memory_space<vmem>>, %arg8: memref<128x128xbf16, #tpu.memory_space<vmem>>, %arg9: memref<1x128xf32, #tpu.memory_space<vmem>>, %arg10: memref<8x128xf32, #tpu.memory_space<vmem>>) attributes {dimension_semantics = [#tpu.dimension_semantics<parallel>], iteration_bounds = array<i64: 1>, scalar_prefetch = 0 : i64, scratch_operands = 0 : i64, tpu.core_type = #tpu.core_type<tc>, window_params = [{transform_indices = @transform_0, window_bounds = array<i64: 8, 32>}, {pipeline_mode = #tpu.pipeline_mode<synchronous>, transform_indices = @transform_1, window_bounds = array<i64: 32, 256>}, {pipeline_mode = #tpu.pipeline_mode<synchronous>, transform_indices = @transform_2, window_bounds = array<i64: 1, 256>}, {pipeline_mode = #tpu.pipeline_mode<synchronous>, transform_indices = @transform_3, window_bounds = array<i64: 256, 256>}, {pipeline_mode = #tpu.pipeline_mode<synchronous>, transform_indices = @transform_4, window_bounds = array<i64: 1, 256>}, {pipeline_mode = #tpu.pipeline_mode<synchronous>, transform_indices = @transform_5, window_bounds = array<i64: 256, 128>}, {pipeline_mode = #tpu.pipeline_mode<synchronous>, transform_indices = @transform_6, window_bounds = array<i64: 1, 128>}, {pipeline_mode = #tpu.pipeline_mode<synchronous>, transform_indices = @transform_7, window_bounds = array<i64: 128, 128>}, {pipeline_mode = #tpu.pipeline_mode<synchronous>, transform_indices = @transform_8, window_bounds = array<i64: 1, 128>}, {transform_indices = @transform_9, window_bounds = array<i64: 8, 128>}]} {
    %c0 = arith.constant 0 : index
    %c0_0 = arith.constant 0 : index
    %0 = vector.load %arg1[%c0, %c0_0] : memref<8x32xbf16, #tpu.memory_space<vmem>>, vector<8x32xbf16>
    %c0_1 = arith.constant 0 : index
    %c0_2 = arith.constant 0 : index
    %1 = vector.load %arg2[%c0_1, %c0_2] : memref<32x256xbf16, #tpu.memory_space<vmem>>, vector<32x256xbf16>
    %cst = arith.constant dense<0.000000e+00> : vector<8x256xf32>
    %2 = tpu.matmul %0, %1, %cst {dimension_numbers = #tpu.dot_dimension_numbers<[1], [0], [0], [1], [0, 0, 1, 1], [], []>} : vector<8x32xbf16>, vector<32x256xbf16>, vector<8x256xf32> -> vector<8x256xf32>
    %c0_3 = arith.constant 0 : index
    %c0_4 = arith.constant 0 : index
    %3 = vector.load %arg3[%c0_3, %c0_4] : memref<1x256xf32, #tpu.memory_space<vmem>>, vector<1x256xf32>
    %4 = vector.broadcast %3 : vector<1x256xf32> to vector<8x256xf32>
    %5 = arith.addf %2, %4 : vector<8x256xf32>
    %6 = math.tanh %5 : vector<8x256xf32>
    %7 = arith.truncf %6 : vector<8x256xf32> to vector<8x256xbf16>
    %c0_5 = arith.constant 0 : index
    %c0_6 = arith.constant 0 : index
    %8 = vector.load %arg4[%c0_5, %c0_6] : memref<256x256xbf16, #tpu.memory_space<vmem>>, vector<256x256xbf16>
    %cst_7 = arith.constant dense<0.000000e+00> : vector<8x256xf32>
    %9 = tpu.matmul %7, %8, %cst_7 {dimension_numbers = #tpu.dot_dimension_numbers<[1], [0], [0], [1], [0, 0, 1, 1], [], []>} : vector<8x256xbf16>, vector<256x256xbf16>, vector<8x256xf32> -> vector<8x256xf32>
    %c0_8 = arith.constant 0 : index
    %c0_9 = arith.constant 0 : index
    %10 = vector.load %arg5[%c0_8, %c0_9] : memref<1x256xf32, #tpu.memory_space<vmem>>, vector<1x256xf32>
    %11 = vector.broadcast %10 : vector<1x256xf32> to vector<8x256xf32>
    %12 = arith.addf %9, %11 : vector<8x256xf32>
    %13 = math.tanh %12 : vector<8x256xf32>
    %14 = arith.truncf %13 : vector<8x256xf32> to vector<8x256xbf16>
    %c0_10 = arith.constant 0 : index
    %c0_11 = arith.constant 0 : index
    %15 = vector.load %arg6[%c0_10, %c0_11] : memref<256x128xbf16, #tpu.memory_space<vmem>>, vector<256x128xbf16>
    %cst_12 = arith.constant dense<0.000000e+00> : vector<8x128xf32>
    %16 = tpu.matmul %14, %15, %cst_12 {dimension_numbers = #tpu.dot_dimension_numbers<[1], [0], [0], [1], [0, 0, 1, 1], [], []>} : vector<8x256xbf16>, vector<256x128xbf16>, vector<8x128xf32> -> vector<8x128xf32>
    %c0_13 = arith.constant 0 : index
    %c0_14 = arith.constant 0 : index
    %17 = vector.load %arg7[%c0_13, %c0_14] : memref<1x128xf32, #tpu.memory_space<vmem>>, vector<1x128xf32>
    %18 = vector.broadcast %17 : vector<1x128xf32> to vector<8x128xf32>
    %19 = arith.addf %16, %18 : vector<8x128xf32>
    %20 = math.tanh %19 : vector<8x128xf32>
    %21 = arith.truncf %20 : vector<8x128xf32> to vector<8x128xbf16>
    %c0_15 = arith.constant 0 : index
    %c0_16 = arith.constant 0 : index
    %22 = vector.load %arg8[%c0_15, %c0_16] : memref<128x128xbf16, #tpu.memory_space<vmem>>, vector<128x128xbf16>
    %cst_17 = arith.constant dense<0.000000e+00> : vector<8x128xf32>
    %23 = tpu.matmul %21, %22, %cst_17 {dimension_numbers = #tpu.dot_dimension_numbers<[1], [0], [0], [1], [0, 0, 1, 1], [], []>} : vector<8x128xbf16>, vector<128x128xbf16>, vector<8x128xf32> -> vector<8x128xf32>
    %c0_18 = arith.constant 0 : index
    %c0_19 = arith.constant 0 : index
    %24 = vector.load %arg9[%c0_18, %c0_19] : memref<1x128xf32, #tpu.memory_space<vmem>>, vector<1x128xf32>
    %25 = vector.broadcast %24 : vector<1x128xf32> to vector<8x128xf32>
    %26 = arith.addf %23, %25 : vector<8x128xf32>
    %c0_20 = arith.constant 0 : index
    %c0_21 = arith.constant 0 : index
    %27 = vector.load %arg10[%c0_20, %c0_21] : memref<8x128xf32, #tpu.memory_space<vmem>>, vector<8x128xf32>
    tpu.vector_store %arg10[%c0_20, %c0_21], %26 {strides = array<i32>} : memref<8x128xf32, #tpu.memory_space<vmem>>, vector<8x128xf32>,
    return
  }
  func.func @transform_0(%arg0: i32) -> (i32, i32) {
    %c0_i32 = arith.constant 0 : i32
    %c0_i32_0 = arith.constant 0 : i32
    return %arg0, %c0_i32 : i32, i32
  }
  func.func @transform_1(%arg0: i32) -> (i32, i32) {
    %c0_i32 = arith.constant 0 : i32
    %c0_i32_0 = arith.constant 0 : i32
    %c0_i32_1 = arith.constant 0 : i32
    return %c0_i32, %c0_i32_0 : i32, i32
  }
  func.func @transform_2(%arg0: i32) -> (i32, i32) {
    %c0_i32 = arith.constant 0 : i32
    %c0_i32_0 = arith.constant 0 : i32
    %c0_i32_1 = arith.constant 0 : i32
    return %c0_i32, %c0_i32_0 : i32, i32
  }
  func.func @transform_3(%arg0: i32) -> (i32, i32) {
    %c0_i32 = arith.constant 0 : i32
    %c0_i32_0 = arith.constant 0 : i32
    %c0_i32_1 = arith.constant 0 : i32
    return %c0_i32, %c0_i32_0 : i32, i32
  }
  func.func @transform_4(%arg0: i32) -> (i32, i32) {
    %c0_i32 = arith.constant 0 : i32
    %c0_i32_0 = arith.constant 0 : i32
    %c0_i32_1 = arith.constant 0 : i32
    return %c0_i32, %c0_i32_0 : i32, i32
  }
  func.func @transform_5(%arg0: i32) -> (i32, i32) {
    %c0_i32 = arith.constant 0 : i32
    %c0_i32_0 = arith.constant 0 : i32
    %c0_i32_1 = arith.constant 0 : i32
    return %c0_i32, %c0_i32_0 : i32, i32
  }
  func.func @transform_6(%arg0: i32) -> (i32, i32) {
    %c0_i32 = arith.constant 0 : i32
    %c0_i32_0 = arith.constant 0 : i32
    %c0_i32_1 = arith.constant 0 : i32
    return %c0_i32, %c0_i32_0 : i32, i32
  }
  func.func @transform_7(%arg0: i32) -> (i32, i32) {
    %c0_i32 = arith.constant 0 : i32
    %c0_i32_0 = arith.constant 0 : i32
    %c0_i32_1 = arith.constant 0 : i32
    return %c0_i32, %c0_i32_0 : i32, i32
  }
  func.func @transform_8(%arg0: i32) -> (i32, i32) {
    %c0_i32 = arith.constant 0 : i32
    %c0_i32_0 = arith.constant 0 : i32
    %c0_i32_1 = arith.constant 0 : i32
    return %c0_i32, %c0_i32_0 : i32, i32
  }
  func.func @transform_9(%arg0: i32) -> (i32, i32) {
    %c0_i32 = arith.constant 0 : i32
    %c0_i32_0 = arith.constant 0 : i32
    return %arg0, %c0_i32 : i32, i32
  }
}

</mosaic_0001>

<llo_original>
// kernel: sub.17
$region0: #{sub.17}
  #allocation0 [shape = 's32[1]{0}', space=sflag, size = 0x4, scoped, tag = 'scoped memory for sub.17']
  %s0 = inlined_call_operand.vmem [shape: f32[1,256], index: 0, kind: input, shape index: {}]
  %s1 = inlined_call_operand.vmem [shape: f32[1,256], index: 1, kind: input, shape index: {}]
  %s2 = inlined_call_operand.vmem [shape: f32[1,256], index: 2, kind: output, shape index: {}]
  %v3 = vld [vmem:[%s0] sm:$0x1]
  %v4 = vld [vmem:[%s1] sm:$0x1]
  %5 = xla_tuple %v3, %v4
  %6 = xla_tuple %5
  %v7 = vsub.f32 %v3, %v4
  %8 = xla_tuple %v7
  %9 = vst [vmem:[%s2] sm:$0x1] %v7
  %s10 = scalar_lea.vmem %s0, 1
  %v11 = vld [vmem:[%s10] sm:$0x1]
  %s12 = scalar_lea.vmem %s1, 1
  %v13 = vld [vmem:[%s12] sm:$0x1]
  %14 = xla_tuple %v11, %v13
  %15 = xla_tuple %14
  %v16 = vsub.f32 %v11, %v13
  %17 = xla_tuple %v16
  %s18 = scalar_lea.vmem %s2, 1
  %19 = vst [vmem:[%s18] sm:$0x1] %v16

// kernel: actor_critic_forward.1
$region0: #{actor_critic_forward.1}
  #allocation0 [shape = 'u32[]', space=smem, size = 0x4, offset = 0x4, fixed_abs, tag = 'smem constant byte address 0x4 - core index']
  #allocation1 [shape = 'u32[144,128]{1,0:T(1,128)}', space=vmem, size = 0x12000, scoped, tag = 'internal scratch']
  %s0 = inlined_call_operand.vmem [shape: bf16[8,32], index: 0, kind: input, shape index: {}]
  %s1 = inlined_call_operand.vmem [shape: bf16[32,256], index: 1, kind: input, shape index: {}]
  %s2 = inlined_call_operand.vmem [shape: f32[1,256], index: 2, kind: input, shape index: {}]
  %s3 = inlined_call_operand.vmem [shape: bf16[256,256], index: 3, kind: input, shape index: {}]
  %s4 = inlined_call_operand.vmem [shape: f32[1,256], index: 4, kind: input, shape index: {}]
  %s5 = inlined_call_operand.vmem [shape: bf16[256,128], index: 5, kind: input, shape index: {}]
  %s6 = inlined_call_operand.vmem [shape: f32[1,128], index: 6, kind: input, shape index: {}]
  %s7 = inlined_call_operand.vmem [shape: bf16[128,128], index: 7, kind: input, shape index: {}]
  %s8 = inlined_call_operand.vmem [shape: f32[1,128], index: 8, kind: input, shape index: {}]
  %s9 = inlined_call_operand.vmem [shape: f32[8,128], index: 9, kind: output, shape index: {}]
  %s10 = sld [smem:[#allocation0]]
  $region46: #{actor_critic_forward.1} parent=0
    _
  %s12 = ssub.s32 1, %s10
  %s13 = scalar_select 0, %s12, %s10
  // Predicated region
  $region2: #{actor_critic_forward.1} parent=0 // pred_check
    _
  $region3: #{actor_critic_forward.1} parent=0 // pred_check_branch
    %15 = sbr.rel (0) target = $region5
  $region4: #{actor_critic_forward.1} parent=0 // pred_region
    _
  $region5: #{actor_critic_forward.1} parent=0 // pred_fallthru
    _
  // Predicated region
  $region6: #{actor_critic_forward.1} parent=0 // pred_check
    _
  $region7: #{actor_critic_forward.1} parent=0 // pred_check_branch
    %17 = sbr.rel (0) target = $region9
  $region8: #{actor_critic_forward.1} parent=0 // pred_region
    _
  $region9: #{actor_critic_forward.1} parent=0 // pred_fallthru
    _
  // Predicated region
  $region10: #{actor_critic_forward.1} parent=0 // pred_check
    _
  $region11: #{actor_critic_forward.1} parent=0 // pred_check_branch
    %19 = sbr.rel (0) target = $region13
  $region12: #{actor_critic_forward.1} parent=0 // pred_region
    _
  $region13: #{actor_critic_forward.1} parent=0 // pred_fallthru
    _
  // Predicated region
  $region14: #{actor_critic_forward.1} parent=0 // pred_check
    _
  $region15: #{actor_critic_forward.1} parent=0 // pred_check_branch
    %21 = sbr.rel (0) target = $region17
  $region16: #{actor_critic_forward.1} parent=0 // pred_region
    _
  $region17: #{actor_critic_forward.1} parent=0 // pred_fallthru
    _
  // Predicated region
  $region18: #{actor_critic_forward.1} parent=0 // pred_check
    _
  $region19: #{actor_critic_forward.1} parent=0 // pred_check_branch
    %23 = sbr.rel (0) target = $region21
  $region20: #{actor_critic_forward.1} parent=0 // pred_region
    _
  $region21: #{actor_critic_forward.1} parent=0 // pred_fallthru
    _
  // Predicated region
  $region22: #{actor_critic_forward.1} parent=0 // pred_check
    _
  $region23: #{actor_critic_forward.1} parent=0 // pred_check_branch
    %25 = sbr.rel (0) target = $region25
  $region24: #{actor_critic_forward.1} parent=0 // pred_region
    _
  $region25: #{actor_critic_forward.1} parent=0 // pred_fallthru
    _
  // Predicated region
  $region26: #{actor_critic_forward.1} parent=0 // pred_check
    _
  $region27: #{actor_critic_forward.1} parent=0 // pred_check_branch
    %27 = sbr.rel (0) target = $region29
  $region28: #{actor_critic_forward.1} parent=0 // pred_region
    _
  $region29: #{actor_critic_forward.1} parent=0 // pred_fallthru
    _
  // Predicated region
  $region30: #{actor_critic_forward.1} parent=0 // pred_check
    _
  $region31: #{actor_critic_forward.1} parent=0 // pred_check_branch
    %29 = sbr.rel (0) target = $region33
  $region32: #{actor_critic_forward.1} parent=0 // pred_region
    _
  $region33: #{actor_critic_forward.1} parent=0 // pred_fallthru
    _
  // Predicated region
  $region34: #{actor_critic_forward.1} parent=0 // pred_check
    _
  $region35: #{actor_critic_forward.1} parent=0 // pred_check_branch
    %31 = sbr.rel (0) target = $region37
  $region36: #{actor_critic_forward.1} parent=0 // pred_region
    _
  $region37: #{actor_critic_forward.1} parent=0 // pred_fallthru
    _
  %v33 = vld [vmem:[%s0] sm:$0xf]
  %v34 = vld [vmem:[%s1] sm:$0xff]
  %v35 = vld [vmem:[%s1 + $0x8] sm:$0xff]
  %v36 = vld [vmem:[%s1 + $0x10] sm:$0xff]
  %v37 = vld [vmem:[%s1 + $0x18] sm:$0xff]
  %v38 = vld [vmem:[%s2] sm:$0x3]
  %v40 = vlaneseq
  %v41 = vshrl.u32 %v40, 7
  %v42 = vsub.s32 0, %v41
  %v43 = vrot.slane %v38, %v42
  %v44 = vlaneseq
  %v45 = vshrl.u32 %v44, 7
  %v46 = vsub.s32 1, %v45
  %v47 = vrot.slane %v38, %v46
  %v54 = vunpack.c.l.b16 %v34
  %v55 = vunpack.c.h.b16 %v34
  %v56 = vunpack.c.l.b16 %v35
  %v57 = vunpack.c.h.b16 %v35
  %v58 = vunpack.c.l.b16 %v36
  %v59 = vunpack.c.h.b16 %v36
  %v60 = vunpack.c.l.b16 %v37
  %v61 = vunpack.c.h.b16 %v37
  %v62 = vpack.c.b16 %v56, %v54
  %v63 = vpack.c.b16 %v57, %v55
  %v64 = vpack.c.b16 %v60, %v58
  %v65 = vpack.c.b16 %v61, %v59
  %vm70 = vcmask 261120
  %v72 = vsel %vm70, %v33, 0
  %74 = vmatprep.subr.bf16.mxu0 %v63
  %75 = vmatpush1.bf16.msra.mxu0 %v62
  %76 = vmatprep.subr.bf16.mxu0 %v65
  %77 = vmatpush1.bf16.msra.mxu0 %v64
  %78 = vmatprep.subr.bf16.mxu0 0
  %79 = vmatpush1.bf16.msra.mxu0 0
  %80 = vmatprep.subr.bf16.mxu0 0
  %81 = vmatpush1.bf16.msra.mxu0 0
  %82 = vmatprep.subr.bf16.mxu0 0
  %83 = vmatpush1.bf16.msra.mxu0 0
  %84 = vmatprep.subr.bf16.mxu0 0
  %85 = vmatpush1.bf16.msra.mxu0 0
  %86 = vmatprep.subr.bf16.mxu0 0
  %87 = vmatpush1.bf16.msra.mxu0 0
  %88 = vmatprep.subr.bf16.mxu0 0
  %89 = vmatpush1.bf16.msra.mxu0 0
  %90 = vmatprep.subr.bf16.mxu0 0
  %91 = vmatpush1.bf16.msra.mxu0 0
  %92 = vmatprep.subr.bf16.mxu0 0
  %93 = vmatpush1.bf16.msra.mxu0 0
  %94 = vmatprep.subr.bf16.mxu0 0
  %95 = vmatpush1.bf16.msra.mxu0 0
  %96 = vmatprep.subr.bf16.mxu0 0
  %97 = vmatpush1.bf16.msra.mxu0 0
  %98 = vmatprep.subr.bf16.mxu0 0
  %99 = vmatpush1.bf16.msra.mxu0 0
  %100 = vmatprep.subr.bf16.mxu0 0
  %101 = vmatpush1.bf16.msra.mxu0 0
  %102 = vmatprep.subr.bf16.mxu0 0
  %103 = vmatpush1.bf16.msra.mxu0 0
  %104 = vmatprep.subr.bf16.mxu0 0
  %105 = vmatpush1.bf16.msra.mxu0 0
  %106 = vmatprep.mubr.bf16.mxu0 0
  %107 = vmatmul.mubr.bf16.gmra.mrb[0].mxu0 %v72
  %v108 = vpop.f32.mrb[0].mxu0
  %v109 = vadd.f32 %v43, %v108
  %v110 = vpop.f32.mrb[0].mxu0
  %v111 = vadd.f32 %v47, %v110
  %v112 = vpop.f32.mrb[0].mxu0
  %v113 = vpop.f32.mrb[0].mxu0
  %114 = vdwg.mxu0
  %v115 = vtanh.pop %v109
  %v116 = vtanh.pop %v111
  %v117 = vpack.c.bf16 %v115, %v115
  %v118 = vpack.c.bf16 %v116, %v116
  %v119 = vld [vmem:[%s3] sm:$0xff]
  %v120 = vld [vmem:[%s3 + $0x8] sm:$0xff]
  %v121 = vld [vmem:[%s3 + $0x10] sm:$0xff]
  %v122 = vld [vmem:[%s3 + $0x18] sm:$0xff]
  %v123 = vld [vmem:[%s3 + $0x20] sm:$0xff]
  %v124 = vld [vmem:[%s3 + $0x28] sm:$0xff]
  %v125 = vld [vmem:[%s3 + $0x30] sm:$0xff]
  %v126 = vld [vmem:[%s3 + $0x38] sm:$0xff]
  %v127 = vld [vmem:[%s3 + $0x40] sm:$0xff]
  %v128 = vld [vmem:[%s3 + $0x48] sm:$0xff]
  %v129 = vld [vmem:[%s3 + $0x50] sm:$0xff]
  %v130 = vld [vmem:[%s3 + $0x58] sm:$0xff]
  %v131 = vld [vmem:[%s3 + $0x60] sm:$0xff]
  %v132 = vld [vmem:[%s3 + $0x68] sm:$0xff]
  %v133 = vld [vmem:[%s3 + $0x70] sm:$0xff]
  %v134 = vld [vmem:[%s3 + $0x78] sm:$0xff]
  %v135 = vld [vmem:[%s3 + $0x80] sm:$0xff]
  %v136 = vld [vmem:[%s3 + $0x88] sm:$0xff]
  %v137 = vld [vmem:[%s3 + $0x90] sm:$0xff]
  %v138 = vld [vmem:[%s3 + $0x98] sm:$0xff]
  %v139 = vld [vmem:[%s3 + $0xa0] sm:$0xff]
  %v140 = vld [vmem:[%s3 + $0xa8] sm:$0xff]
  %v141 = vld [vmem:[%s3 + $0xb0] sm:$0xff]
  %v142 = vld [vmem:[%s3 + $0xb8] sm:$0xff]
  %v143 = vld [vmem:[%s3 + $0xc0] sm:$0xff]
  %v144 = vld [vmem:[%s3 + $0xc8] sm:$0xff]
  %v145 = vld [vmem:[%s3 + $0xd0] sm:$0xff]
  %v146 = vld [vmem:[%s3 + $0xd8] sm:$0xff]
  %v147 = vld [vmem:[%s3 + $0xe0] sm:$0xff]
  %v148 = vld [vmem:[%s3 + $0xe8] sm:$0xff]
  %v149 = vld [vmem:[%s3 + $0xf0] sm:$0xff]
  %v150 = vld [vmem:[%s3 + $0xf8] sm:$0xff]
  %v151 = vld [vmem:[%s4] sm:$0x3]
  %v153 = vlaneseq
  %v154 = vshrl.u32 %v153, 7
  %v155 = vsub.s32 0, %v154
  %v156 = vrot.slane %v151, %v155
  %v157 = vlaneseq
  %v158 = vshrl.u32 %v157, 7
  %v159 = vsub.s32 1, %v158
  %v160 = vrot.slane %v151, %v159
  %v195 = vunpack.c.l.b16 %v119
  %v196 = vunpack.c.h.b16 %v119
  %v197 = vunpack.c.l.b16 %v120
  %v198 = vunpack.c.h.b16 %v120
  %v199 = vunpack.c.l.b16 %v121
  %v200 = vunpack.c.h.b16 %v121
  %v201 = vunpack.c.l.b16 %v122
  %v202 = vunpack.c.h.b16 %v122
  %v203 = vunpack.c.l.b16 %v123
  %v204 = vunpack.c.h.b16 %v123
  %v205 = vunpack.c.l.b16 %v124
  %v206 = vunpack.c.h.b16 %v124
  %v207 = vunpack.c.l.b16 %v125
  %v208 = vunpack.c.h.b16 %v125
  %v209 = vunpack.c.l.b16 %v126
  %v210 = vunpack.c.h.b16 %v126
  %v211 = vunpack.c.l.b16 %v127
  %v212 = vunpack.c.h.b16 %v127
  %v213 = vunpack.c.l.b16 %v128
  %v214 = vunpack.c.h.b16 %v128
  %v215 = vunpack.c.l.b16 %v129
  %v216 = vunpack.c.h.b16 %v129
  %v217 = vunpack.c.l.b16 %v130
  %v218 = vunpack.c.h.b16 %v130
  %v219 = vunpack.c.l.b16 %v131
  %v220 = vunpack.c.h.b16 %v131
  %v221 = vunpack.c.l.b16 %v132
  %v222 = vunpack.c.h.b16 %v132
  %v223 = vunpack.c.l.b16 %v133
  %v224 = vunpack.c.h.b16 %v133
  %v225 = vunpack.c.l.b16 %v134
  %v226 = vunpack.c.h.b16 %v134
  %v227 = vunpack.c.l.b16 %v135
  %v228 = vunpack.c.h.b16 %v135
  %v229 = vunpack.c.l.b16 %v136
  %v230 = vunpack.c.h.b16 %v136
  %v231 = vunpack.c.l.b16 %v137
  %v232 = vunpack.c.h.b16 %v137
  %v233 = vunpack.c.l.b16 %v138
  %v234 = vunpack.c.h.b16 %v138
  %v235 = vunpack.c.l.b16 %v139
  %v236 = vunpack.c.h.b16 %v139
  %v237 = vunpack.c.l.b16 %v140
  %v238 = vunpack.c.h.b16 %v140
  %v239 = vunpack.c.l.b16 %v141
  %v240 = vunpack.c.h.b16 %v141
  %v241 = vunpack.c.l.b16 %v142
  %v242 = vunpack.c.h.b16 %v142
  %v243 = vunpack.c.l.b16 %v143
  %v244 = vunpack.c.h.b16 %v143
  %v245 = vunpack.c.l.b16 %v144
  %v246 = vunpack.c.h.b16 %v144
  %v247 = vunpack.c.l.b16 %v145
  %v248 = vunpack.c.h.b16 %v145
  %v249 = vunpack.c.l.b16 %v146
  %v250 = vunpack.c.h.b16 %v146
  %v251 = vunpack.c.l.b16 %v147
  %v252 = vunpack.c.h.b16 %v147
  %v253 = vunpack.c.l.b16 %v148
  %v254 = vunpack.c.h.b16 %v148
  %v255 = vunpack.c.l.b16 %v149
  %v256 = vunpack.c.h.b16 %v149
  %v257 = vunpack.c.l.b16 %v150
  %v258 = vunpack.c.h.b16 %v150
  %v259 = vpack.c.b16 %v197, %v195
  %v260 = vpack.c.b16 %v198, %v196
  %v261 = vpack.c.b16 %v201, %v199
  %v262 = vpack.c.b16 %v202, %v200
  %v263 = vpack.c.b16 %v205, %v203
  %v264 = vpack.c.b16 %v206, %v204
  %v265 = vpack.c.b16 %v209, %v207
  %v266 = vpack.c.b16 %v210, %v208
  %v267 = vpack.c.b16 %v213, %v211
  %v268 = vpack.c.b16 %v214, %v212
  %v269 = vpack.c.b16 %v217, %v215
  %v270 = vpack.c.b16 %v218, %v216
  %v271 = vpack.c.b16 %v221, %v219
  %v272 = vpack.c.b16 %v222, %v220
  %v273 = vpack.c.b16 %v225, %v223
  %v274 = vpack.c.b16 %v226, %v224
  %v275 = vpack.c.b16 %v229, %v227
  %v276 = vpack.c.b16 %v230, %v228
  %v277 = vpack.c.b16 %v233, %v231
  %v278 = vpack.c.b16 %v234, %v232
  %v279 = vpack.c.b16 %v237, %v235
  %v280 = vpack.c.b16 %v238, %v236
  %v281 = vpack.c.b16 %v241, %v239
  %v282 = vpack.c.b16 %v242, %v240
  %v283 = vpack.c.b16 %v245, %v243
  %v284 = vpack.c.b16 %v246, %v244
  %v285 = vpack.c.b16 %v249, %v247
  %v286 = vpack.c.b16 %v250, %v248
  %v287 = vpack.c.b16 %v253, %v251
  %v288 = vpack.c.b16 %v254, %v252
  %v289 = vpack.c.b16 %v257, %v255
  %v290 = vpack.c.b16 %v258, %v256
  %323 = vmatprep.subr.bf16.mxu0 %v260
  %324 = vmatpush1.bf16.msra.mxu0 %v259
  %325 = vmatprep.subr.bf16.mxu0 %v262
  %326 = vmatpush1.bf16.msra.mxu0 %v261
  %327 = vmatprep.subr.bf16.mxu0 %v264
  %328 = vmatpush1.bf16.msra.mxu0 %v263
  %329 = vmatprep.subr.bf16.mxu0 %v266
  %330 = vmatpush1.bf16.msra.mxu0 %v265
  %331 = vmatprep.subr.bf16.mxu0 %v268
  %332 = vmatpush1.bf16.msra.mxu0 %v267
  %333 = vmatprep.subr.bf16.mxu0 %v270
  %334 = vmatpush1.bf16.msra.mxu0 %v269
  %335 = vmatprep.subr.bf16.mxu0 %v272
  %336 = vmatpush1.bf16.msra.mxu0 %v271
  %337 = vmatprep.subr.bf16.mxu0 %v274
  %338 = vmatpush1.bf16.msra.mxu0 %v273
  %339 = vmatprep.subr.bf16.mxu0 %v276
  %340 = vmatpush1.bf16.msra.mxu0 %v275
  %341 = vmatprep.subr.bf16.mxu0 %v278
  %342 = vmatpush1.bf16.msra.mxu0 %v277
  %343 = vmatprep.subr.bf16.mxu0 %v280
  %344 = vmatpush1.bf16.msra.mxu0 %v279
  %345 = vmatprep.subr.bf16.mxu0 %v282
  %346 = vmatpush1.bf16.msra.mxu0 %v281
  %347 = vmatprep.subr.bf16.mxu0 %v284
  %348 = vmatpush1.bf16.msra.mxu0 %v283
  %349 = vmatprep.subr.bf16.mxu0 %v286
  %350 = vmatpush1.bf16.msra.mxu0 %v285
  %351 = vmatprep.subr.bf16.mxu0 %v288
  %352 = vmatpush1.bf16.msra.mxu0 %v287
  %353 = vmatprep.subr.bf16.mxu0 %v290
  %354 = vmatpush1.bf16.msra.mxu0 %v289
  %355 = vmatprep.mubr.bf16.mxu0 %v118
  %356 = vmatmul.mubr.bf16.gmra.mrb[0].mxu0 %v117
  %v357 = vpop.f32.mrb[0].mxu0
  %v358 = vadd.f32 %v156, %v357
  %v359 = vpop.f32.mrb[0].mxu0
  %v360 = vadd.f32 %v160, %v359
  %v361 = vpop.f32.mrb[0].mxu0
  %v362 = vpop.f32.mrb[0].mxu0
  %363 = vdwg.mxu0
  %v364 = vtanh.pop %v358
  %v365 = vtanh.pop %v360
  %v366 = vpack.c.bf16 %v364, %v364
  %v367 = vpack.c.bf16 %v365, %v365
  %v368 = vld [vmem:[%s5] sm:$0xf]
  %v369 = vld [vmem:[%s5 + $0x4] sm:$0xf]
  %v370 = vld [vmem:[%s5 + $0x8] sm:$0xf]
  %v371 = vld [vmem:[%s5 + $0xc] sm:$0xf]
  %v372 = vld [vmem:[%s5 + $0x10] sm:$0xf]
  %v373 = vld [vmem:[%s5 + $0x14] sm:$0xf]
  %v374 = vld [vmem:[%s5 + $0x18] sm:$0xf]
  %v375 = vld [vmem:[%s5 + $0x1c] sm:$0xf]
  %v376 = vld [vmem:[%s5 + $0x20] sm:$0xf]
  %v377 = vld [vmem:[%s5 + $0x24] sm:$0xf]
  %v378 = vld [vmem:[%s5 + $0x28] sm:$0xf]
  %v379 = vld [vmem:[%s5 + $0x2c] sm:$0xf]
  %v380 = vld [vmem:[%s5 + $0x30] sm:$0xf]
  %v381 = vld [vmem:[%s5 + $0x34] sm:$0xf]
  %v382 = vld [vmem:[%s5 + $0x38] sm:$0xf]
  %v383 = vld [vmem:[%s5 + $0x3c] sm:$0xf]
  %v384 = vld [vmem:[%s5 + $0x40] sm:$0xf]
  %v385 = vld [vmem:[%s5 + $0x44] sm:$0xf]
  %v386 = vld [vmem:[%s5 + $0x48] sm:$0xf]
  %v387 = vld [vmem:[%s5 + $0x4c] sm:$0xf]
  %v388 = vld [vmem:[%s5 + $0x50] sm:$0xf]
  %v389 = vld [vmem:[%s5 + $0x54] sm:$0xf]
  %v390 = vld [vmem:[%s5 + $0x58] sm:$0xf]
  %v391 = vld [vmem:[%s5 + $0x5c] sm:$0xf]
  %v392 = vld [vmem:[%s5 + $0x60] sm:$0xf]
  %v393 = vld [vmem:[%s5 + $0x64] sm:$0xf]
  %v394 = vld [vmem:[%s5 + $0x68] sm:$0xf]
  %v395 = vld [vmem:[%s5 + $0x6c] sm:$0xf]
  %v396 = vld [vmem:[%s5 + $0x70] sm:$0xf]
  %v397 = vld [vmem:[%s5 + $0x74] sm:$0xf]
  %v398 = vld [vmem:[%s5 + $0x78] sm:$0xf]
  %v399 = vld [vmem:[%s5 + $0x7c] sm:$0xf]
  %v400 = vld [vmem:[%s6] sm:$0x1]
  %v402 = vlaneseq
  %v403 = vshrl.u32 %v402, 7
  %v404 = vsub.s32 0, %v403
  %v405 = vrot.slane %v400, %v404
  %v439 = vunpack.c.l.b16 %v368
  %v440 = vunpack.c.l.b16 %v369
  %v441 = vunpack.c.l.b16 %v370
  %v442 = vunpack.c.l.b16 %v371
  %v443 = vunpack.c.l.b16 %v372
  %v444 = vunpack.c.l.b16 %v373
  %v445 = vunpack.c.l.b16 %v374
  %v446 = vunpack.c.l.b16 %v375
  %v447 = vunpack.c.l.b16 %v376
  %v448 = vunpack.c.l.b16 %v377
  %v449 = vunpack.c.l.b16 %v378
  %v450 = vunpack.c.l.b16 %v379
  %v451 = vunpack.c.l.b16 %v380
  %v452 = vunpack.c.l.b16 %v381
  %v453 = vunpack.c.l.b16 %v382
  %v454 = vunpack.c.l.b16 %v383
  %v455 = vunpack.c.l.b16 %v384
  %v456 = vunpack.c.l.b16 %v385
  %v457 = vunpack.c.l.b16 %v386
  %v458 = vunpack.c.l.b16 %v387
  %v459 = vunpack.c.l.b16 %v388
  %v460 = vunpack.c.l.b16 %v389
  %v461 = vunpack.c.l.b16 %v390
  %v462 = vunpack.c.l.b16 %v391
  %v463 = vunpack.c.l.b16 %v392
  %v464 = vunpack.c.l.b16 %v393
  %v465 = vunpack.c.l.b16 %v394
  %v466 = vunpack.c.l.b16 %v395
  %v467 = vunpack.c.l.b16 %v396
  %v468 = vunpack.c.l.b16 %v397
  %v469 = vunpack.c.l.b16 %v398
  %v470 = vunpack.c.l.b16 %v399
  %v471 = vpack.c.b16 %v440, %v439
  %v472 = vpack.c.b16 %v442, %v441
  %v473 = vpack.c.b16 %v444, %v443
  %v474 = vpack.c.b16 %v446, %v445
  %v475 = vpack.c.b16 %v448, %v447
  %v476 = vpack.c.b16 %v450, %v449
  %v477 = vpack.c.b16 %v452, %v451
  %v478 = vpack.c.b16 %v454, %v453
  %v479 = vpack.c.b16 %v456, %v455
  %v480 = vpack.c.b16 %v458, %v457
  %v481 = vpack.c.b16 %v460, %v459
  %v482 = vpack.c.b16 %v462, %v461
  %v483 = vpack.c.b16 %v464, %v463
  %v484 = vpack.c.b16 %v466, %v465
  %v485 = vpack.c.b16 %v468, %v467
  %v486 = vpack.c.b16 %v470, %v469
  %503 = vmatprep.subr.bf16.mxu0 0
  %504 = vmatpush1.bf16.msra.mxu0 %v471
  %505 = vmatprep.subr.bf16.mxu0 0
  %506 = vmatpush1.bf16.msra.mxu0 %v472
  %507 = vmatprep.subr.bf16.mxu0 0
  %508 = vmatpush1.bf16.msra.mxu0 %v473
  %509 = vmatprep.subr.bf16.mxu0 0
  %510 = vmatpush1.bf16.msra.mxu0 %v474
  %511 = vmatprep.subr.bf16.mxu0 0
  %512 = vmatpush1.bf16.msra.mxu0 %v475
  %513 = vmatprep.subr.bf16.mxu0 0
  %514 = vmatpush1.bf16.msra.mxu0 %v476
  %515 = vmatprep.subr.bf16.mxu0 0
  %516 = vmatpush1.bf16.msra.mxu0 %v477
  %517 = vmatprep.subr.bf16.mxu0 0
  %518 = vmatpush1.bf16.msra.mxu0 %v478
  %519 = vmatprep.subr.bf16.mxu0 0
  %520 = vmatpush1.bf16.msra.mxu0 %v479
  %521 = vmatprep.subr.bf16.mxu0 0
  %522 = vmatpush1.bf16.msra.mxu0 %v480
  %523 = vmatprep.subr.bf16.mxu0 0
  %524 = vmatpush1.bf16.msra.mxu0 %v481
  %525 = vmatprep.subr.bf16.mxu0 0
  %526 = vmatpush1.bf16.msra.mxu0 %v482
  %527 = vmatprep.subr.bf16.mxu0 0
  %528 = vmatpush1.bf16.msra.mxu0 %v483
  %529 = vmatprep.subr.bf16.mxu0 0
  %530 = vmatpush1.bf16.msra.mxu0 %v484
  %531 = vmatprep.subr.bf16.mxu0 0
  %532 = vmatpush1.bf16.msra.mxu0 %v485
  %533 = vmatprep.subr.bf16.mxu0 0
  %534 = vmatpush1.bf16.msra.mxu0 %v486
  %535 = vmatprep.mubr.bf16.mxu0 %v367
  %536 = vmatmul.mubr.bf16.gmra.mrb[0].mxu0 %v366
  %v537 = vpop.f32.mrb[0].mxu0
  %v538 = vadd.f32 %v405, %v537
  %v539 = vpop.f32.mrb[0].mxu0
  %v540 = vpop.f32.mrb[0].mxu0
  %v541 = vpop.f32.mrb[0].mxu0
  %542 = vdwg.mxu0
  %v543 = vtanh.pop %v538
  %v544 = vpack.c.bf16 %v543, %v543
  %v545 = vld [vmem:[%s7] sm:$0xf]
  %v546 = vld [vmem:[%s7 + $0x4] sm:$0xf]
  %v547 = vld [vmem:[%s7 + $0x8] sm:$0xf]
  %v548 = vld [vmem:[%s7 + $0xc] sm:$0xf]
  %v549 = vld [vmem:[%s7 + $0x10] sm:$0xf]
  %v550 = vld [vmem:[%s7 + $0x14] sm:$0xf]
  %v551 = vld [vmem:[%s7 + $0x18] sm:$0xf]
  %v552 = vld [vmem:[%s7 + $0x1c] sm:$0xf]
  %v553 = vld [vmem:[%s7 + $0x20] sm:$0xf]
  %v554 = vld [vmem:[%s7 + $0x24] sm:$0xf]
  %v555 = vld [vmem:[%s7 + $0x28] sm:$0xf]
  %v556 = vld [vmem:[%s7 + $0x2c] sm:$0xf]
  %v557 = vld [vmem:[%s7 + $0x30] sm:$0xf]
  %v558 = vld [vmem:[%s7 + $0x34] sm:$0xf]
  %v559 = vld [vmem:[%s7 + $0x38] sm:$0xf]
  %v560 = vld [vmem:[%s7 + $0x3c] sm:$0xf]
  %v561 = vld [vmem:[%s8] sm:$0x1]
  %v563 = vlaneseq
  %v564 = vshrl.u32 %v563, 7
  %v565 = vsub.s32 0, %v564
  %v566 = vrot.slane %v561, %v565
  %v584 = vunpack.c.l.b16 %v545
  %v585 = vunpack.c.l.b16 %v546
  %v586 = vunpack.c.l.b16 %v547
  %v587 = vunpack.c.l.b16 %v548
  %v588 = vunpack.c.l.b16 %v549
  %v589 = vunpack.c.l.b16 %v550
  %v590 = vunpack.c.l.b16 %v551
  %v591 = vunpack.c.l.b16 %v552
  %v592 = vunpack.c.l.b16 %v553
  %v593 = vunpack.c.l.b16 %v554
  %v594 = vunpack.c.l.b16 %v555
  %v595 = vunpack.c.l.b16 %v556
  %v596 = vunpack.c.l.b16 %v557
  %v597 = vunpack.c.l.b16 %v558
  %v598 = vunpack.c.l.b16 %v559
  %v599 = vunpack.c.l.b16 %v560
  %v600 = vpack.c.b16 %v585, %v584
  %v601 = vpack.c.b16 %v587, %v586
  %v602 = vpack.c.b16 %v589, %v588
  %v603 = vpack.c.b16 %v591, %v590
  %v604 = vpack.c.b16 %v593, %v592
  %v605 = vpack.c.b16 %v595, %v594
  %v606 = vpack.c.b16 %v597, %v596
  %v607 = vpack.c.b16 %v599, %v598
  %616 = vmatprep.subr.bf16.mxu0 0
  %617 = vmatpush1.bf16.msra.mxu0 %v600
  %618 = vmatprep.subr.bf16.mxu0 0
  %619 = vmatpush1.bf16.msra.mxu0 %v601
  %620 = vmatprep.subr.bf16.mxu0 0
  %621 = vmatpush1.bf16.msra.mxu0 %v602
  %622 = vmatprep.subr.bf16.mxu0 0
  %623 = vmatpush1.bf16.msra.mxu0 %v603
  %624 = vmatprep.subr.bf16.mxu0 0
  %625 = vmatpush1.bf16.msra.mxu0 %v604
  %626 = vmatprep.subr.bf16.mxu0 0
  %627 = vmatpush1.bf16.msra.mxu0 %v605
  %628 = vmatprep.subr.bf16.mxu0 0
  %629 = vmatpush1.bf16.msra.mxu0 %v606
  %630 = vmatprep.subr.bf16.mxu0 0
  %631 = vmatpush1.bf16.msra.mxu0 %v607
  %632 = vmatprep.subr.bf16.mxu0 0
  %633 = vmatpush1.bf16.msra.mxu0 0
  %634 = vmatprep.subr.bf16.mxu0 0
  %635 = vmatpush1.bf16.msra.mxu0 0
  %636 = vmatprep.subr.bf16.mxu0 0
  %637 = vmatpush1.bf16.msra.mxu0 0
  %638 = vmatprep.subr.bf16.mxu0 0
  %639 = vmatpush1.bf16.msra.mxu0 0
  %640 = vmatprep.subr.bf16.mxu0 0
  %641 = vmatpush1.bf16.msra.mxu0 0
  %642 = vmatprep.subr.bf16.mxu0 0
  %643 = vmatpush1.bf16.msra.mxu0 0
  %644 = vmatprep.subr.bf16.mxu0 0
  %645 = vmatpush1.bf16.msra.mxu0 0
  %646 = vmatprep.subr.bf16.mxu0 0
  %647 = vmatpush1.bf16.msra.mxu0 0
  %648 = vmatprep.mubr.bf16.mxu0 0
  %649 = vmatmul.mubr.bf16.gmra.mrb[0].mxu0 %v544
  %v650 = vpop.f32.mrb[0].mxu0
  %v651 = vadd.f32 %v566, %v650
  %v652 = vpop.f32.mrb[0].mxu0
  %v653 = vpop.f32.mrb[0].mxu0
  %v654 = vpop.f32.mrb[0].mxu0
  %655 = vdwg.mxu0
  %656 = vst [vmem:[%s9] sm:$0xff] %v651
  // Predicated region
  $region38: #{actor_critic_forward.1} parent=0 // pred_check
    _
  $region39: #{actor_critic_forward.1} parent=0 // pred_check_branch
    %658 = sbr.rel (0) target = $region41
  $region40: #{actor_critic_forward.1} parent=0 // pred_region
    _
  $region41: #{actor_critic_forward.1} parent=0 // pred_fallthru
    _
  // Predicated region
  $region42: #{actor_critic_forward.1} parent=0 // pred_check
    _
  $region43: #{actor_critic_forward.1} parent=0 // pred_check_branch
    %660 = sbr.rel (0) target = $region45
  $region44: #{actor_critic_forward.1} parent=0 // pred_region
    _
  $region45: #{actor_critic_forward.1} parent=0 // pred_fallthru
    _

</llo_original>
